<compile_context>
chip_gen: v6e
topology: v6e:2x2x1
jax: 0.10.0
libtpu: 0.0.40
codegen_flags: <defaults>
</compile_context>

<pallas_src>
import jax
import jax.numpy as jnp
from jax.experimental import pallas as pl
from jax.experimental.pallas import tpu as pltpu

LANE = 128
N_BLOCKS_M = 2  # 2-way M split -> both TCs on v7x; one cheap extra step on v5e/v6e


def _conv2d_gemm_kernel(w_ref, p_ref, o_ref):
    # w_ref: (Cout, K+1)  flattened weight with bias folded in as the last column
    # p_ref: (K+1, TM)    im2col patches^T tile (ones row matches the bias column)
    # o_ref: (Cout, TM)   lane-dense output tile, TM multiple of 128 -> unmasked vst
    o_ref[...] = jnp.dot(
        w_ref[...], p_ref[...], preferred_element_type=jnp.float32
    ).astype(o_ref.dtype)


@jax.jit
def conv2d_pallas(x_nchw, weight_oihw, bias):
    """Conv2d, stride=1, VALID padding, bias. Mirrors nn.Conv2d forward.

    x_nchw:      [N, Cin, H, W]        (PyTorch layout)
    weight_oihw: [Cout, Cin, KH, KW]   (PyTorch layout)
    bias:        [Cout]
    returns:     [N, Cout, Hout, Wout] (PyTorch layout)
    """
    n, c_in, h, w = x_nchw.shape
    c_out, _, kh, kw = weight_oihw.shape
    h_out = h - kh + 1
    w_out = w - kw + 1

    m = n * h_out * w_out          # 392 for the test shapes
    k = kh * kw * c_in             # 90
    kp = k + 1                     # +1 contraction row for the folded-in bias

    # M is the lane axis of the transposed GEMM: pad to N_BLOCKS_M blocks,
    # each a multiple of 128 lanes (unmasked stores).
    block_m = ((pl.cdiv(m, N_BLOCKS_M) + LANE - 1) // LANE) * LANE
    m_pad = block_m * N_BLOCKS_M   # 512 for m = 392

    dtype = x_nchw.dtype

    # ---- wrapper-side layout plumbing (plain JAX, traced once) ----
    # NCHW -> NHWC (channels on the fast axis), then im2col with (kh, kw, cin)
    # column ordering.
    x_nhwc = jnp.transpose(x_nchw, (0, 2, 3, 1))
    patches = jnp.stack(
        [x_nhwc[:, dh:dh + h_out, dw:dw + w_out, :]
         for dh in range(kh) for dw in range(kw)],
        axis=3,
    ).reshape(m, k)                                              # (M, K)
    # Fold bias into the contraction: ones column on patches.
    patches = jnp.concatenate([patches, jnp.ones((m, 1), dtype)], axis=1)  # (M, K+1)
    # Transpose and zero-pad the lane (M) axis; padded columns are all-zero,
    # so padded outputs are 0 and get sliced off in the epilogue.
    patches_t = jnp.pad(patches.T, ((0, 0), (0, m_pad - m)))     # (K+1, M_pad)

    # OIHW -> (Cout, KH, KW, Cin) -> (Cout, K), then append bias as a column.
    w_flat = jnp.transpose(weight_oihw, (0, 2, 3, 1)).reshape(c_out, k)
    w_flat = jnp.concatenate(
        [w_flat, bias.reshape(c_out, 1).astype(dtype)], axis=1)  # (Cout, K+1)

    out_t = pl.pallas_call(
        _conv2d_gemm_kernel,
        out_shape=jax.ShapeDtypeStruct((c_out, m_pad), dtype),
        grid_spec=pltpu.PrefetchScalarGridSpec(
            num_scalar_prefetch=0,
            grid=(N_BLOCKS_M,),
            in_specs=[
                # Weight block index is constant across the grid -> stays resident.
                pl.BlockSpec((c_out, kp), lambda i: (0, 0)),
                pl.BlockSpec((kp, block_m), lambda i: (0, i)),
            ],
            out_specs=pl.BlockSpec((c_out, block_m), lambda i: (0, i)),
        ),
        compiler_params=pltpu.CompilerParams(
            dimension_semantics=("parallel",),
        ),
    )(w_flat, patches_t)

    # (Cout, M) -> (Cout, N, Hout, Wout) -> NCHW (leading-axis swap only).
    out = out_t[:, :m].reshape(c_out, n, h_out, w_out)
    return jnp.transpose(out, (1, 0, 2, 3))


if __name__ == "__main__":
    # Module defaults: inp=10, out=16, kernel_size=3.
    N, C_IN, H, W = 2, 10, 16, 16
    C_OUT, K = 16, 3

    key = jax.random.PRNGKey(0)
    kx, kw_, kb = jax.random.split(key, 3)

    x = jax.random.normal(kx, (N, C_IN, H, W), dtype=jnp.float32)
    # Deterministic synthetic parameters (same shapes as nn.Conv2d(10, 16, 3)).
    weight = jax.random.normal(kw_, (C_OUT, C_IN, K, K), dtype=jnp.float32) * 0.1
    bias = jax.random.normal(kb, (C_OUT,), dtype=jnp.float32) * 0.1

    out = conv2d_pallas(x, weight, bias)
    out = jax.block_until_ready(out)

    # Cross-check against XLA's conv (same NCHW/OIHW semantics as PyTorch).
    ref = jax.lax.conv_general_dilated(
        x, weight, window_strides=(1, 1), padding="VALID",
        dimension_numbers=("NCHW", "OIHW", "NCHW"),
    ) + bias[None, :, None, None]

    assert out.shape == (N, C_OUT, H - K + 1, W - K + 1), out.shape
    assert jnp.allclose(out, ref, atol=1e-4, rtol=1e-4), float(
        jnp.max(jnp.abs(out - ref))
    )

    print("KERNEL_OK")
</pallas_src>

<mosaic_0001>
module attributes {stable_mosaic.version = 11 : i64} {
  func.func @_conv2d_gemm_kernel(%arg0: i32, %arg1: memref<16x91xf32, #tpu.memory_space<vmem>>, %arg2: memref<91x256xf32, #tpu.memory_space<vmem>>, %arg3: memref<16x256xf32, #tpu.memory_space<vmem>>) attributes {dimension_semantics = [#tpu.dimension_semantics<parallel>], iteration_bounds = array<i64: 2>, scalar_prefetch = 0 : i64, scratch_operands = 0 : i64, tpu.core_type = #tpu.core_type<tc>, window_params = [{pipeline_mode = #tpu.pipeline_mode<synchronous>, transform_indices = @transform_0, window_bounds = array<i64: 16, 91>}, {transform_indices = @transform_1, window_bounds = array<i64: 91, 256>}, {transform_indices = @transform_2, window_bounds = array<i64: 16, 256>}]} {
    %c0 = arith.constant 0 : index
    %c0_0 = arith.constant 0 : index
    %0 = vector.load %arg1[%c0, %c0_0] : memref<16x91xf32, #tpu.memory_space<vmem>>, vector<16x91xf32>
    %c0_1 = arith.constant 0 : index
    %c0_2 = arith.constant 0 : index
    %1 = vector.load %arg2[%c0_1, %c0_2] : memref<91x256xf32, #tpu.memory_space<vmem>>, vector<91x256xf32>
    %cst = arith.constant dense<0.000000e+00> : vector<16x256xf32>
    %2 = tpu.matmul %0, %1, %cst {dimension_numbers = #tpu.dot_dimension_numbers<[1], [0], [0], [1], [0, 0, 1, 1], [], []>} : vector<16x91xf32>, vector<91x256xf32>, vector<16x256xf32> -> vector<16x256xf32>
    %c0_3 = arith.constant 0 : index
    %c0_4 = arith.constant 0 : index
    %3 = vector.load %arg3[%c0_3, %c0_4] : memref<16x256xf32, #tpu.memory_space<vmem>>, vector<16x256xf32>
    tpu.vector_store %arg3[%c0_3, %c0_4], %2 {strides = array<i32>} : memref<16x256xf32, #tpu.memory_space<vmem>>, vector<16x256xf32>,
    return
  }
  func.func @transform_0(%arg0: i32) -> (i32, i32) {
    %c0_i32 = arith.constant 0 : i32
    %c0_i32_0 = arith.constant 0 : i32
    %c0_i32_1 = arith.constant 0 : i32
    return %c0_i32, %c0_i32_0 : i32, i32
  }
  func.func @transform_1(%arg0: i32) -> (i32, i32) {
    %c0_i32 = arith.constant 0 : i32
    %c0_i32_0 = arith.constant 0 : i32
    return %c0_i32, %arg0 : i32, i32
  }
  func.func @transform_2(%arg0: i32) -> (i32, i32) {
    %c0_i32 = arith.constant 0 : i32
    %c0_i32_0 = arith.constant 0 : i32
    return %c0_i32, %arg0 : i32, i32
  }
}

</mosaic_0001>

<llo_original>
// kernel: conv2d_pallas.1
$region0: #{conv2d_pallas.1}
  #allocation0 [shape = 'u32[]', space=smem, size = 0x4, offset = 0x4, fixed_abs, tag = 'smem constant byte address 0x4 - core index']
  #allocation1 [shape = 'u32[144,128]{1,0:T(1,128)}', space=vmem, size = 0x12000, scoped, tag = 'internal scratch']
  %s0 = inlined_call_operand.vmem [shape: f32[16,91], index: 0, kind: input, shape index: {}]
  %s1 = inlined_call_operand.vmem [shape: f32[91,512], index: 1, kind: input, shape index: {}]
  %s2 = inlined_call_operand.vmem [shape: f32[16,512], index: 2, kind: output, shape index: {}]
  %s3 = sld [smem:[#allocation0]]
  $region83: #{conv2d_pallas.1} parent=0
    _
  %s5 = ssub.s32 1, %s3
  %s6 = scalar_select 0, %s5, %s3
  $region1: #{conv2d_pallas.1} parent=0
    #allocation2 [shape = 'u8[196608]{0}', space=vmem, size = 0x30000, scoped, tag = 'input window, operand 1']
    #allocation3 [shape = 'u8[32768]{0}', space=vmem, size = 0x8000, scoped, tag = 'output window, operand 0']
    loop: start=0, step=1, limit=4
    $region2: #{conv2d_pallas.1} parent=1 // loop_pre_header
      _
    $region3: #{conv2d_pallas.1} parent=1 // loop_header
      %s8 = sphi 0, %s12
      %p9 = scmp.ge.s32.totalorder %s8, 4
      %s16 = sphi 0, %s16
      %s18 = sphi 0, %s16
      %s19 = sphi 0, %s18
      %s33 = sphi 0, %s19
      %s39 = sphi 0, %s41
      %s42 = sphi 0, %s39
      %s43 = sphi 0, %s42
      %s59 = sphi 0, %s43
      %s65 = sphi 0, %s67
      %s68 = sphi 0, %s65
      %s69 = sphi 0, %s68
      %s85 = sphi 0, %s69
    $region4: #{conv2d_pallas.1} parent=1 // loop_header_branch
      %11 = sbr.rel (%p9) target = $region8
    $region5: #{conv2d_pallas.1} parent=1 // loop_body
      %s13 = ssub.s32 %s8, 1
      %s14 = ssub.s32 %s8, 2
      %s15 = sadd.s32 %s8, 1
      %s17 = sadd.s32 %s16, 1
      %p20 = scmp.eq.s32.totalorder %s8, 1
      %p21 = scmp.ne.s32.totalorder %s16, %s18
      %p22 = scmp.eq.s32.totalorder %s8, 0
      %p23 = por %p21, %p22
      %p24 = scmp.ne.s32.totalorder %s16, %s18
      %p25 = scmp.eq.s32.totalorder %s13, 1
      %p26 = por %p24, %p25
      %p27 = scmp.ne.s32.totalorder %s18, %s19
      %p28 = scmp.eq.s32.totalorder %s13, 0
      %p29 = por %p27, %p28
      %p30 = scmp.ne.s32.totalorder %s18, %s19
      %p31 = scmp.eq.s32.totalorder %s14, 1
      %p32 = por %p30, %p31
      %p34 = scmp.ne.s32.totalorder %s19, %s33
      %p35 = scmp.eq.s32.totalorder %s14, 0
      %p36 = por %p34, %p35
      %s37 = ssub.s32 %s8, %s15
      %p38 = scmp.eq.s32.totalorder %s37, 0
      %s40 = sadd.s32 %s39, 1
      %s41 = scalar_select %p38, %s39, %s40
      %p44 = pneg %p38
      %p45 = scmp.eq.s32.totalorder %s8, 1
      %p46 = por %p44, %p45
      %p47 = scmp.ne.s32.totalorder %s39, %s42
      %p48 = scmp.eq.s32.totalorder %s8, 0
      %p49 = por %p47, %p48
      %p50 = scmp.ne.s32.totalorder %s39, %s42
      %p51 = scmp.eq.s32.totalorder %s13, 1
      %p52 = por %p50, %p51
      %p53 = scmp.ne.s32.totalorder %s42, %s43
      %p54 = scmp.eq.s32.totalorder %s13, 0
      %p55 = por %p53, %p54
      %p56 = scmp.ne.s32.totalorder %s42, %s43
      %p57 = scmp.eq.s32.totalorder %s14, 1
      %p58 = por %p56, %p57
      %p60 = scmp.ne.s32.totalorder %s43, %s59
      %p61 = scmp.eq.s32.totalorder %s14, 0
      %p62 = por %p60, %p61
      %s63 = ssub.s32 %s8, %s15
      %p64 = scmp.eq.s32.totalorder %s63, 0
      %s66 = sadd.s32 %s65, 1
      %s67 = scalar_select %p64, %s65, %s66
      %p70 = pneg %p64
      %p71 = scmp.eq.s32.totalorder %s8, 1
      %p72 = por %p70, %p71
      %p73 = scmp.ne.s32.totalorder %s65, %s68
      %p74 = scmp.eq.s32.totalorder %s8, 0
      %p75 = por %p73, %p74
      %p76 = scmp.ne.s32.totalorder %s65, %s68
      %p77 = scmp.eq.s32.totalorder %s13, 1
      %p78 = por %p76, %p77
      %p79 = scmp.ne.s32.totalorder %s68, %s69
      %p80 = scmp.eq.s32.totalorder %s13, 0
      %p81 = por %p79, %p80
      %p82 = scmp.ne.s32.totalorder %s68, %s69
      %p83 = scmp.eq.s32.totalorder %s14, 1
      %p84 = por %p82, %p83
      %p86 = scmp.ne.s32.totalorder %s69, %s85
      %p87 = scmp.eq.s32.totalorder %s14, 0
      %p88 = por %p86, %p87
      %p89 = scmp.le.s32.totalorder 1, %s8
      %p90 = scmp.lt.s32.totalorder %s8, 3
      %p91 = pnand %p89, %p90
      %p92 = pneg %p91
      // Predicated region
      $region9: #{conv2d_pallas.1} parent=5 // pred_check
        _
      $region10: #{conv2d_pallas.1} parent=5 // pred_check_branch
        %94 = sbr.rel (%p91) target = $region12
      $region11: #{conv2d_pallas.1} parent=5 // pred_region
        %s95 = ssub.s32 %s8, 1
        // Predicated region
        $region13: #{conv2d_pallas.1} parent=11 // pred_check
          %p96 = pneg %p29
        $region14: #{conv2d_pallas.1} parent=11 // pred_check_branch
          %98 = sbr.rel (%p96) target = $region16
        $region15: #{conv2d_pallas.1} parent=11 // pred_region
          _
        $region16: #{conv2d_pallas.1} parent=11 // pred_fallthru
          _
      $region12: #{conv2d_pallas.1} parent=5 // pred_fallthru
        _
      %p99 = scmp.lt.s32.totalorder %s8, 2
      // Predicated region
      $region17: #{conv2d_pallas.1} parent=5 // pred_check
        %p100 = pneg %p99
      $region18: #{conv2d_pallas.1} parent=5 // pred_check_branch
        %102 = sbr.rel (%p100) target = $region20
      $region19: #{conv2d_pallas.1} parent=5 // pred_region
        // Predicated region
        $region21: #{conv2d_pallas.1} parent=19 // pred_check
          %p103 = pneg %p49
        $region22: #{conv2d_pallas.1} parent=19 // pred_check_branch
          %105 = sbr.rel (%p103) target = $region24
        $region23: #{conv2d_pallas.1} parent=19 // pred_region
          %s106 = sand.u32 %s39, 1
          %s107 = sand.u32 %s39, 1
          %s108 = smul.addr %s107, 192
          %s109 = scalar_lea.vmem [#allocation2], %s108
          %s110 = smul.u32 2, %s8
          %s111 = smul.addr %s110, 8
          %s112 = scalar_lea.vmem %s1, %s111
          // Predicated region
          $region25: #{conv2d_pallas.1} parent=23 // pred_check
            _
          $region26: #{conv2d_pallas.1} parent=23 // pred_check_branch
            %114 = sbr.rel (0) target = $region28
          $region27: #{conv2d_pallas.1} parent=23 // pred_region
            // Predicated region
            $region29: #{conv2d_pallas.1} parent=27 // pred_check
              _
            $region30: #{conv2d_pallas.1} parent=27 // pred_check_branch
              %116 = sbr.rel (0) target = $region32
            $region31: #{conv2d_pallas.1} parent=27 // pred_region
              loop: start=0, step=1, limit=1
              $region33: #{conv2d_pallas.1} parent=31 // loop_pre_header
                _
              $region34: #{conv2d_pallas.1} parent=31 // loop_header
                %s118 = sphi 0, %s122
                %p119 = scmp.ge.s32.totalorder %s118, 1
                %s123 = sphi %s112, %s112
                %s124 = sphi %s109, %s109
              $region35: #{conv2d_pallas.1} parent=31 // loop_header_branch
                %121 = sbr.rel (%p119) target = $region39
              $region36: #{conv2d_pallas.1} parent=31 // loop_body
                %v125 = vld [vmem:[%s123] sm:$0xff]
                %126 = vst [vmem:[%s124] sm:$0xff] %v125
                %v127 = vld [vmem:[%s123 + $0x8] sm:$0xff]
                %128 = vst [vmem:[%s124 + $0x8] sm:$0xff] %v127
                %v129 = vld [vmem:[%s123 + $0x20] sm:$0xff]
                %130 = vst [vmem:[%s124 + $0x10] sm:$0xff] %v129
                %v131 = vld [vmem:[%s123 + $0x28] sm:$0xff]
                %132 = vst [vmem:[%s124 + $0x18] sm:$0xff] %v131
                %v133 = vld [vmem:[%s123 + $0x40] sm:$0xff]
                %134 = vst [vmem:[%s124 + $0x20] sm:$0xff] %v133
                %v135 = vld [vmem:[%s123 + $0x48] sm:$0xff]
                %136 = vst [vmem:[%s124 + $0x28] sm:$0xff] %v135
                %v137 = vld [vmem:[%s123 + $0x60] sm:$0xff]
                %138 = vst [vmem:[%s124 + $0x30] sm:$0xff] %v137
                %v139 = vld [vmem:[%s123 + $0x68] sm:$0xff]
                %140 = vst [vmem:[%s124 + $0x38] sm:$0xff] %v139
                %v141 = vld [vmem:[%s123 + $0x80] sm:$0xff]
                %142 = vst [vmem:[%s124 + $0x40] sm:$0xff] %v141
                %v143 = vld [vmem:[%s123 + $0x88] sm:$0xff]
                %144 = vst [vmem:[%s124 + $0x48] sm:$0xff] %v143
                %v145 = vld [vmem:[%s123 + $0xa0] sm:$0xff]
                %146 = vst [vmem:[%s124 + $0x50] sm:$0xff] %v145
                %v147 = vld [vmem:[%s123 + $0xa8] sm:$0xff]
                %148 = vst [vmem:[%s124 + $0x58] sm:$0xff] %v147
                %v149 = vld [vmem:[%s123 + $0xc0] sm:$0xff]
                %150 = vst [vmem:[%s124 + $0x60] sm:$0xff] %v149
                %v151 = vld [vmem:[%s123 + $0xc8] sm:$0xff]
                %152 = vst [vmem:[%s124 + $0x68] sm:$0xff] %v151
                %v153 = vld [vmem:[%s123 + $0xe0] sm:$0xff]
                %154 = vst [vmem:[%s124 + $0x70] sm:$0xff] %v153
                %v155 = vld [vmem:[%s123 + $0xe8] sm:$0xff]
                %156 = vst [vmem:[%s124 + $0x78] sm:$0xff] %v155
                %v157 = vld [vmem:[%s123 + $0x100] sm:$0xff]
                %158 = vst [vmem:[%s124 + $0x80] sm:$0xff] %v157
                %v159 = vld [vmem:[%s123 + $0x108] sm:$0xff]
                %160 = vst [vmem:[%s124 + $0x88] sm:$0xff] %v159
                %v161 = vld [vmem:[%s123 + $0x120] sm:$0xff]
                %162 = vst [vmem:[%s124 + $0x90] sm:$0xff] %v161
                %v163 = vld [vmem:[%s123 + $0x128] sm:$0xff]
                %164 = vst [vmem:[%s124 + $0x98] sm:$0xff] %v163
                %v165 = vld [vmem:[%s123 + $0x140] sm:$0xff]
                %166 = vst [vmem:[%s124 + $0xa0] sm:$0xff] %v165
                %v167 = vld [vmem:[%s123 + $0x148] sm:$0xff]
                %168 = vst [vmem:[%s124 + $0xa8] sm:$0xff] %v167
                %v169 = vld [vmem:[%s123 + $0x160] sm:$0xff]
                %170 = vst [vmem:[%s124 + $0xb0] sm:$0xff] %v169
                %v171 = vld [vmem:[%s123 + $0x168] sm:$0xff]
                %172 = vst [vmem:[%s124 + $0xb8] sm:$0xff] %v171
              $region37: #{conv2d_pallas.1} parent=31 // loop_footer
                %s122 = sadd.s32 1, %s118
              $region38: #{conv2d_pallas.1} parent=31 // loop_footer_branch
                %117 = sbr.rel target = $region34
              $region39: #{conv2d_pallas.1} parent=31 // loop_exit
                _
            $region32: #{conv2d_pallas.1} parent=27 // pred_fallthru
              _
            // Predicated region
            $region40: #{conv2d_pallas.1} parent=27 // pred_check
              _
            $region41: #{conv2d_pallas.1} parent=27 // pred_check_branch
              %174 = sbr.rel target = $region43
            $region42: #{conv2d_pallas.1} parent=27 // pred_region
              _
            $region43: #{conv2d_pallas.1} parent=27 // pred_fallthru
              _
          $region28: #{conv2d_pallas.1} parent=23 // pred_fallthru
            _
          %175 = vnop
        $region24: #{conv2d_pallas.1} parent=19 // pred_fallthru
          _
      $region20: #{conv2d_pallas.1} parent=5 // pred_fallthru
        _
      %p176 = scmp.le.s32.totalorder 1, %s8
      %p177 = scmp.lt.s32.totalorder %s8, 3
      %p178 = pnand %p176, %p177
      %p179 = pneg %p178
      // Predicated region
      $region44: #{conv2d_pallas.1} parent=5 // pred_check
        _
      $region45: #{conv2d_pallas.1} parent=5 // pred_check_branch
        %181 = sbr.rel (%p178) target = $region47
      $region46: #{conv2d_pallas.1} parent=5 // pred_region
        %s182 = ssub.s32 %s8, 1
        %s183 = sand.u32 %s42, 1
        %s184 = sand.u32 %s42, 1
        %s185 = smul.addr %s184, 192
        %s186 = scalar_lea.vmem [#allocation2], %s185
        // Predicated region
        $region48: #{conv2d_pallas.1} parent=46 // pred_check
          %p187 = pneg %p55
        $region49: #{conv2d_pallas.1} parent=46 // pred_check_branch
          %189 = sbr.rel (%p187) target = $region51
        $region50: #{conv2d_pallas.1} parent=46 // pred_region
          _
        $region51: #{conv2d_pallas.1} parent=46 // pred_fallthru
          _
        %p190 = pneg %p29
        %p191 = pneg %p26
        %s192 = sand.u32 %s42, 1
        %s193 = sand.u32 %s42, 1
        %s194 = smul.addr %s193, 192
        %s195 = scalar_lea.vmem [#allocation2], %s194
        %p196 = pneg %p55
        %p197 = pneg %p52
        %p198 = pneg %p81
        %p199 = pneg %p78
        %s200 = sand.u32 %s68, 1
        %s201 = sand.u32 %s68, 1
        %s202 = smul.addr %s201, 32
        %s203 = scalar_lea.vmem [#allocation3], %s202
        %s204 = smul.u32 2, %s13
        %s205 = smul.u32 2, %s13
        %v206 = vld [vmem:[%s0] sm:$0xff]
        %v207 = vld [vmem:[%s0 + $0x8] sm:$0xff]
        %v208 = vld [vmem:[%s186] sm:$0xff]
        %v209 = vld [vmem:[%s186 + $0x8] sm:$0xff]
        %v210 = vld [vmem:[%s186 + $0x10] sm:$0xff]
        %v211 = vld [vmem:[%s186 + $0x18] sm:$0xff]
        %v212 = vld [vmem:[%s186 + $0x20] sm:$0xff]
        %v213 = vld [vmem:[%s186 + $0x28] sm:$0xff]
        %v214 = vld [vmem:[%s186 + $0x30] sm:$0xff]
        %v215 = vld [vmem:[%s186 + $0x38] sm:$0xff]
        %v216 = vld [vmem:[%s186 + $0x40] sm:$0xff]
        %v217 = vld [vmem:[%s186 + $0x48] sm:$0xff]
        %v218 = vld [vmem:[%s186 + $0x50] sm:$0xff]
        %v219 = vld [vmem:[%s186 + $0x58] sm:$0xff]
        %v220 = vld [vmem:[%s186 + $0x60] sm:$0xff]
        %v221 = vld [vmem:[%s186 + $0x68] sm:$0xff]
        %v222 = vld [vmem:[%s186 + $0x70] sm:$0xff]
        %v223 = vld [vmem:[%s186 + $0x78] sm:$0xff]
        %v224 = vld [vmem:[%s186 + $0x80] sm:$0xff]
        %v225 = vld [vmem:[%s186 + $0x88] sm:$0xff]
        %v226 = vld [vmem:[%s186 + $0x90] sm:$0xff]
        %v227 = vld [vmem:[%s186 + $0x98] sm:$0xff]
        %v228 = vld [vmem:[%s186 + $0xa0] sm:$0xff]
        %v229 = vld [vmem:[%s186 + $0xa8] sm:$0xff]
        %v230 = vld [vmem:[%s186 + $0xb0] sm:$0x7]
        %v231 = vld [vmem:[%s186 + $0xb8] sm:$0x7]
        %vm232 = vcmask 744448
        %v234 = vsel %vm232, %v206, 0
        %v237 = vsel %vm232, %v207, 0
        %vm239 = vcmask 1042432
        %v241 = vsel %vm239, %v230, 0
        %v244 = vsel %vm239, %v231, 0
        %246 = vmatprep.subr.mxu0 0.0
        %247 = vmatpush1.msra.mxu0 0.0
        %248 = vmatprep.subr.mxu0 0.0
        %249 = vmatpush1.msra.mxu0 0.0
        %250 = vmatprep.subr.mxu0 0.0
        %251 = vmatpush1.msra.mxu0 0.0
        %252 = vmatprep.subr.mxu0 0.0
        %253 = vmatpush1.msra.mxu0 0.0
        %254 = vmatprep.subr.mxu0 %v244
        %255 = vmatpush1.msra.mxu0 %v241
        %256 = vmatprep.subr.mxu0 %v229
        %257 = vmatpush1.msra.mxu0 %v228
        %258 = vmatprep.subr.mxu0 %v227
        %259 = vmatpush1.msra.mxu0 %v226
        %260 = vmatprep.subr.mxu0 %v225
        %261 = vmatpush1.msra.mxu0 %v224
        %262 = vmatprep.subr.mxu0 %v223
        %263 = vmatpush1.msra.mxu0 %v222
        %264 = vmatprep.subr.mxu0 %v221
        %265 = vmatpush1.msra.mxu0 %v220
        %266 = vmatprep.subr.mxu0 %v219
        %267 = vmatpush1.msra.mxu0 %v218
        %268 = vmatprep.subr.mxu0 %v217
        %269 = vmatpush1.msra.mxu0 %v216
        %270 = vmatprep.subr.mxu0 %v215
        %271 = vmatpush1.msra.mxu0 %v214
        %272 = vmatprep.subr.mxu0 %v213
        %273 = vmatpush1.msra.mxu0 %v212
        %274 = vmatprep.subr.mxu0 %v211
        %275 = vmatpush1.msra.mxu0 %v210
        %276 = vmatprep.subr.mxu0 %v209
        %277 = vmatpush1.msra.mxu0 %v208
        %278 = vmatprep.subr.mxu0 0.0
        %279 = vmatpush2.msra.mxu0 0.0
        %280 = vmatprep.subr.mxu0 0.0
        %281 = vmatpush2.msra.mxu0 0.0
        %282 = vmatprep.subr.mxu0 0.0
        %283 = vmatpush2.msra.mxu0 0.0
        %284 = vmatprep.subr.mxu0 0.0
        %285 = vmatpush2.msra.mxu0 0.0
        %286 = vmatprep.subr.mxu0 0.0
        %287 = vmatpush2.msra.mxu0 0.0
        %288 = vmatprep.subr.mxu0 0.0
        %289 = vmatpush2.msra.mxu0 0.0
        %290 = vmatprep.subr.mxu0 0.0
        %291 = vmatpush2.msra.mxu0 0.0
        %292 = vmatprep.subr.mxu0 0.0
        %293 = vmatpush2.msra.mxu0 0.0
        %294 = vmatprep.subr.mxu0 0.0
        %295 = vmatpush2.msra.mxu0 0.0
        %296 = vmatprep.subr.mxu0 0.0
        %297 = vmatpush2.msra.mxu0 0.0
        %298 = vmatprep.subr.mxu0 0.0
        %299 = vmatpush2.msra.mxu0 0.0
        %300 = vmatprep.subr.mxu0 0.0
        %301 = vmatpush2.msra.mxu0 0.0
        %302 = vmatprep.subr.mxu0 0.0
        %303 = vmatpush2.msra.mxu0 0.0
        %304 = vmatprep.subr.mxu0 0.0
        %305 = vmatpush2.msra.mxu0 0.0
        %306 = vmatprep.subr.mxu0 0.0
        %307 = vmatpush2.msra.mxu0 0.0
        %308 = vmatprep.subr.mxu0 0.0
        %309 = vmatpush2.msra.mxu0 0.0
        %310 = vmatprep.mubr.f32.mxu0 0.0
        %311 = vmatmul.mubr.f32.gmra.mxu0 %v234
        %v312 = vpop.f32.mrf.mxu0
        %v313 = vadd.f32 0.0, %v312
        %v314 = vpop.f32.mrf.mxu0
        %v315 = vadd.f32 0.0, %v314
        %316 = vmatprep.mubr.f32.mxu0 0.0
        %317 = vmatmul.mubr.f32.gmra.mxu0 %v237
        %v318 = vpop.f32.mrf.mxu0
        %v319 = vadd.f32 0.0, %v318
        %v320 = vpop.f32.mrf.mxu0
        %v321 = vadd.f32 0.0, %v320
        %322 = vdwg.mxu0
        %323 = vst [vmem:[%s203] sm:$0xff] %v313
        %324 = vst [vmem:[%s203 + $0x8] sm:$0xff] %v315
        %325 = vst [vmem:[%s203 + $0x10] sm:$0xff] %v319
        %326 = vst [vmem:[%s203 + $0x18] sm:$0xff] %v321
        %s327 = sand.u32 %s68, 1
        %s328 = sand.u32 %s68, 1
        %s329 = smul.addr %s328, 32
        %s330 = scalar_lea.vmem [#allocation3], %s329
        // Predicated region
        $region52: #{conv2d_pallas.1} parent=46 // pred_check
          %p331 = pneg %p78
        $region53: #{conv2d_pallas.1} parent=46 // pred_check_branch
          %333 = sbr.rel (%p331) target = $region55
        $region54: #{conv2d_pallas.1} parent=46 // pred_region
          %s334 = smul.u32 2, %s13
          %s335 = smul.addr %s334, 8
          %s336 = scalar_lea.vmem %s2, %s335
          // Predicated region
          $region56: #{conv2d_pallas.1} parent=54 // pred_check
            _
          $region57: #{conv2d_pallas.1} parent=54 // pred_check_branch
            %338 = sbr.rel (0) target = $region59
          $region58: #{conv2d_pallas.1} parent=54 // pred_region
            // Predicated region
            $region60: #{conv2d_pallas.1} parent=58 // pred_check
              _
            $region61: #{conv2d_pallas.1} parent=58 // pred_check_branch
              %340 = sbr.rel (0) target = $region63
            $region62: #{conv2d_pallas.1} parent=58 // pred_region
              loop: start=0, step=1, limit=1
              $region64: #{conv2d_pallas.1} parent=62 // loop_pre_header
                _
              $region65: #{conv2d_pallas.1} parent=62 // loop_header
                %s342 = sphi 0, %s346
                %p343 = scmp.ge.s32.totalorder %s342, 1
                %s347 = sphi %s330, %s330
                %s348 = sphi %s336, %s336
              $region66: #{conv2d_pallas.1} parent=62 // loop_header_branch
                %345 = sbr.rel (%p343) target = $region70
              $region67: #{conv2d_pallas.1} parent=62 // loop_body
                %v349 = vld [vmem:[%s347] sm:$0xff]
                %350 = vst [vmem:[%s348] sm:$0xff] %v349
                %v351 = vld [vmem:[%s347 + $0x8] sm:$0xff]
                %352 = vst [vmem:[%s348 + $0x8] sm:$0xff] %v351
                %v353 = vld [vmem:[%s347 + $0x10] sm:$0xff]
                %354 = vst [vmem:[%s348 + $0x20] sm:$0xff] %v353
                %v355 = vld [vmem:[%s347 + $0x18] sm:$0xff]
                %356 = vst [vmem:[%s348 + $0x28] sm:$0xff] %v355
              $region68: #{conv2d_pallas.1} parent=62 // loop_footer
                %s346 = sadd.s32 1, %s342
              $region69: #{conv2d_pallas.1} parent=62 // loop_footer_branch
                %341 = sbr.rel target = $region65
              $region70: #{conv2d_pallas.1} parent=62 // loop_exit
                _
            $region63: #{conv2d_pallas.1} parent=58 // pred_fallthru
              _
            // Predicated region
            $region71: #{conv2d_pallas.1} parent=58 // pred_check
              _
            $region72: #{conv2d_pallas.1} parent=58 // pred_check_branch
              %358 = sbr.rel target = $region74
            $region73: #{conv2d_pallas.1} parent=58 // pred_region
              _
            $region74: #{conv2d_pallas.1} parent=58 // pred_fallthru
              _
          $region59: #{conv2d_pallas.1} parent=54 // pred_fallthru
            _
          %359 = vnop
        $region55: #{conv2d_pallas.1} parent=46 // pred_fallthru
          _
      $region47: #{conv2d_pallas.1} parent=5 // pred_fallthru
        _
      %p360 = scmp.le.s32.totalorder 2, %s8
      // Predicated region
      $region75: #{conv2d_pallas.1} parent=5 // pred_check
        %p361 = pneg %p360
      $region76: #{conv2d_pallas.1} parent=5 // pred_check_branch
        %363 = sbr.rel (%p361) target = $region78
      $region77: #{conv2d_pallas.1} parent=5 // pred_region
        %s364 = ssub.s32 %s8, 2
        // Predicated region
        $region79: #{conv2d_pallas.1} parent=77 // pred_check
          %p365 = pneg %p84
        $region80: #{conv2d_pallas.1} parent=77 // pred_check_branch
          %367 = sbr.rel (%p365) target = $region82
        $region81: #{conv2d_pallas.1} parent=77 // pred_region
          %s368 = sand.u32 %s69, 1
          %s369 = sand.u32 %s69, 1
          %s370 = smul.addr %s369, 32
          %s371 = scalar_lea.vmem [#allocation3], %s370
        $region82: #{conv2d_pallas.1} parent=77 // pred_fallthru
          _
      $region78: #{conv2d_pallas.1} parent=5 // pred_fallthru
        _
    $region6: #{conv2d_pallas.1} parent=1 // loop_footer
      %s12 = sadd.s32 1, %s8
    $region7: #{conv2d_pallas.1} parent=1 // loop_footer_branch
      %7 = sbr.rel target = $region3
    $region8: #{conv2d_pallas.1} parent=1 // loop_exit
      _

</llo_original>
